<compile_context>
chip_gen: v6e
topology: v6e:2x2x1
jax: 0.10.0
libtpu: 0.0.40
codegen_flags: <defaults>
</compile_context>

<pallas_src>
import functools

import jax
import jax.numpy as jnp
from jax.experimental import pallas as pl
from jax.experimental.pallas import tpu as pltpu

# ---- synthetic "Config" values (deterministic, in-script) -------------------
NUM_CLASSES = 8              # num_classes passed to EndLayers.__init__
CUTOFF = 0.25                # self.cutoff
VAR_FILTER_THRESHOLD = 0.1   # Config.parameters['Var_filtering_threshold'][0]


def _top2_along_sublanes(x):
    """Tournament top-2 (with multiplicity, matching torch.topk) along axis 0.

    x: [C, TB] with C a power of two.  Returns (m1, m2), each [C, TB]; every
    row of m1/m2 holds the column-wise largest / second-largest value.
    Rolls go to the XLU slot, compares to the VPU — no cross-sublane reduces.
    """
    c = x.shape[0]
    r = pltpu.roll(x, shift=1, axis=0)
    m1 = jnp.maximum(x, r)
    m2 = jnp.minimum(x, r)
    shift = 2
    while shift < c:
        r1 = pltpu.roll(m1, shift=shift, axis=0)
        r2 = pltpu.roll(m2, shift=shift, axis=0)
        new_m2 = jnp.maximum(jnp.minimum(m1, r1), jnp.maximum(m2, r2))
        m1 = jnp.maximum(m1, r1)
        m2 = new_m2
        shift *= 2
    return m1, m2


def _endlayers_kernel(xt_ref, out_ref, *, end_type, cutoff, var_cutoff):
    # xt_ref: [C, TB] block of class-major logits; out_ref: [C+1, TB] fused output.
    x = xt_ref[...].astype(jnp.float32)        # in-kernel cast (bf16 logits OK)
    C = x.shape[0]

    need_gap = (end_type == "Var") and (var_cutoff > 0.0)
    c_is_pow2 = (C & (C - 1)) == 0

    # --- max (for softmax) and, if needed, top-2 of the logits ---------------
    # The top-2 gap of the softmax probs equals (1 - exp(x2 - x1)) / sum(exp),
    # so the logit-space tournament also supplies the softmax max for free.
    if need_gap and c_is_pow2:
        m1, m2 = _top2_along_sublanes(x)
        m = m1                                  # [C, TB]; every row = column max
        x1 = m1[0:1, :]
        x2 = m2[0:1, :]
    else:
        m = jnp.max(x, axis=0, keepdims=True)   # [1, TB] sublane reduction
        if need_gap:
            # Tie-aware fallback (non-power-of-2 C), matches torch.topk semantics.
            x1 = m
            n_at_max = jnp.sum((x == m).astype(jnp.float32), axis=0, keepdims=True)
            x2_strict = jnp.max(jnp.where(x < m, x, -jnp.inf), axis=0, keepdims=True)
            x2 = jnp.where(n_at_max >= 2.0, x1, x2_strict)

    # --- softmax along classes (torch.softmax(..., dim=1)) -------------------
    e = jnp.exp(x - m)                                     # EUP
    s = jnp.sum(e, axis=0, keepdims=True)                  # [1, TB]
    inv_s = pl.reciprocal(s, approx=True)                  # EUP slot (nearly free)
    inv_s = inv_s * (2.0 - s * inv_s)                      # one Newton step
    p = e * inv_s                                          # [C, TB]
    out_ref[0:C, :] = p.astype(out_ref.dtype)

    if end_type == "Soft":
        # softMaxUnknown: zero column; the var-filter substitution is a no-op
        # for 'Soft' (it substitutes the identical softmax output), so skip it.
        out_ref[C:C + 1, :] = jnp.zeros_like(s).astype(out_ref.dtype)
        return

    # --- 'Var': unbiased variance of |logits| along classes (torch.var) ------
    # TODO(synk): helperFunctions.renameClasses() is external column renaming; treated as identity.
    a = jnp.abs(x)
    sum_a = jnp.sum(a, axis=0, keepdims=True)              # [1, TB]
    sum_a2 = jnp.sum(a * a, axis=0, keepdims=True)         # [1, TB]
    var = (sum_a2 - sum_a * sum_a * (1.0 / C)) * (1.0 / (C - 1))

    unk = jnp.where(var < cutoff, 2.0, 0.0)                # varmax_final

    if var_cutoff > 0.0:
        # keep = (var < var_cutoff) & (top1 - top2 of softmax < 0.5);
        # rows not kept fall back to the plain softmax output (unknown col = 0).
        gap = (1.0 - jnp.exp(x2 - x1)) * inv_s             # p1 - p2
        keep = (var < var_cutoff) & (gap < 0.5)
        unk = jnp.where(keep, unk, 0.0)

    out_ref[C:C + 1, :] = unk.astype(out_ref.dtype)


def _pick_block_b(B, requested):
    """Lane-block size: large (amortize ~0.35us/step, big DMAs) but >=2 grid
    steps for large B so v7x megacore can shard the parallel axis."""
    if requested is not None:
        bb = min(int(requested), B)
        if bb < B and bb % 128 != 0:
            bb = max(128, (bb // 128) * 128)
        if bb >= B:
            bb = B
        return bb
    if B <= 256:
        return B                                  # single full block
    MAX_BLOCK_B = 16384                           # ~2.2 MiB double-buffered VMEM
    bb = min(MAX_BLOCK_B, ((pl.cdiv(B, 2) + 127) // 128) * 128)
    return bb if bb < B else B


def endlayers_forward(logits, y=None, end_type="Soft",
                      cutoff=CUTOFF, var_cutoff=VAR_FILTER_THRESHOLD,
                      block_b=None, out_dtype=jnp.float32,
                      transposed_io=False, min_pallas_batch=512):
    """Pallas implementation of EndLayers.forward for end_type in {'Soft', 'Var'}.

    transposed_io=True: logits are given as [C, B] and the result is returned
    as [C+1, B], eliminating both wrapper relayout passes (preferred for large B).
    """
    if end_type not in ("Soft", "Var"):
        # TODO(synk): OpenMax / Energy / DOC / COOL / iiMod / Odin paths depend on
        # external libraries, weibull fits and dataloaders; no clean Pallas equivalent.
        raise NotImplementedError(f"end_type={end_type} not supported in the Pallas port")
    del y  # labels only feed rocData/Save_score bookkeeping (side effects)

    if transposed_io:
        C, B = logits.shape
    else:
        B, C = logits.shape
    if C < 2:
        raise ValueError("EndLayers needs >= 2 classes (unbiased variance over dim=1)")

    if B < min_pallas_batch:
        # Nominal batch (=8) case: a fused XLA graph beats kernel launch + relayout.
        x_bc = logits.T if transposed_io else logits
        out_bc = _jax_forward(x_bc, end_type, cutoff, var_cutoff, out_dtype)
        return out_bc.T if transposed_io else out_bc

    bb = _pick_block_b(B, block_b)

    kernel = functools.partial(
        _endlayers_kernel,
        end_type=end_type,
        cutoff=float(cutoff),
        var_cutoff=float(var_cutoff),
    )

    xt = logits if transposed_io else logits.T    # [C, B]; dtype preserved
    out_t = pl.pallas_call(
        kernel,
        out_shape=jax.ShapeDtypeStruct((C + 1, B), out_dtype),
        grid=(pl.cdiv(B, bb),),
        in_specs=[pl.BlockSpec((C, bb), lambda i: (0, i))],
        out_specs=pl.BlockSpec((C + 1, bb), lambda i: (0, i)),
        compiler_params=pltpu.CompilerParams(dimension_semantics=("parallel",)),
    )(xt)

    return out_t if transposed_io else out_t.T


# ---------------- pure-JAX reference / small-batch fast path ----------------
def _jax_forward(logits, end_type, cutoff, var_cutoff, out_dtype=jnp.float32):
    logits = logits.astype(jnp.float32)
    p = jax.nn.softmax(logits, axis=1)
    if end_type == "Var":
        var = jnp.var(jnp.abs(logits), axis=1, ddof=1)
        unk = jnp.where(var < cutoff, 2.0, 0.0)
        if var_cutoff > 0.0:
            top2 = jax.lax.top_k(p, 2)[0]
            keep = (var < var_cutoff) & ((top2[:, 0] - top2[:, 1]) < 0.5)
            unk = jnp.where(keep, unk, 0.0)
    else:
        unk = jnp.zeros((logits.shape[0],), jnp.float32)
    return jnp.concatenate([p, unk[:, None]], axis=1).astype(out_dtype)


if __name__ == "__main__":
    key = jax.random.PRNGKey(0)
    ok = True

    def check(logits_bc, end_type, tol=1e-5, **kw):
        global ok
        y = jnp.zeros((logits_bc.shape[0],), dtype=jnp.int32)  # unused bookkeeping labels
        out = endlayers_forward(logits_bc, y, end_type=end_type, **kw)
        out = jax.block_until_ready(out)
        ref = _jax_forward(logits_bc, end_type, CUTOFF, VAR_FILTER_THRESHOLD)
        if out.shape != ref.shape:
            ok = False
        if not bool(jnp.allclose(out.astype(jnp.float32), ref, atol=tol, rtol=tol)):
            ok = False

    def check_transposed(logits_bc, end_type, tol=1e-5, **kw):
        global ok
        out_t = endlayers_forward(logits_bc.T, None, end_type=end_type,
                                  transposed_io=True, **kw)
        out_t = jax.block_until_ready(out_t)
        ref = _jax_forward(logits_bc, end_type, CUTOFF, VAR_FILTER_THRESHOLD)
        if out_t.shape != (ref.shape[1], ref.shape[0]):
            ok = False
        if not bool(jnp.allclose(out_t.T.astype(jnp.float32), ref, atol=tol, rtol=tol)):
            ok = False

    # Nominal module shapes (batch=8, num_classes=8); force the Pallas path so
    # the kernel itself is exercised at small shapes.
    B, C = 8, NUM_CLASSES
    logits_small = jax.random.normal(key, (B, C), dtype=jnp.float32) * 2.0
    for t in ("Soft", "Var"):
        check(logits_small, t, min_pallas_batch=0)
    # bf16 logits: cast to f32 happens inside the kernel.
    check(logits_small.astype(jnp.bfloat16), "Var", min_pallas_batch=0)
    # Default heuristics at batch=8 -> pure-JAX fast path.
    check(logits_small, "Var")

    # Larger batch: default block picking (>= 2 grid steps, partial trailing block).
    logits_big = jax.random.normal(jax.random.PRNGKey(1), (1000, C), jnp.float32) * 3.0
    check(logits_big, "Var")
    check(logits_big, "Soft")
    # Explicit small block_b: 8 grid steps including a partial one.
    check(logits_big, "Var", block_b=128)
    # bf16 fused output (halves the write stream); compare at bf16 tolerance.
    check(logits_big, "Var", out_dtype=jnp.bfloat16, tol=1e-2)
    # Transposed I/O path: no wrapper relayout passes.
    check_transposed(logits_big[:640], "Var")

    print("KERNEL_OK" if ok else "MISMATCH")
</pallas_src>

<mosaic_0001>
module attributes {stable_mosaic.version = 11 : i64} {
  func.func @_endlayers_kernel(%arg0: i32, %arg1: memref<8x8xf32, #tpu.memory_space<vmem>>, %arg2: memref<9x8xf32, #tpu.memory_space<vmem>>) attributes {dimension_semantics = [#tpu.dimension_semantics<parallel>], iteration_bounds = array<i64: 1>, scalar_prefetch = 0 : i64, scratch_operands = 0 : i64, tpu.core_type = #tpu.core_type<tc>, window_params = [{transform_indices = @transform_0, window_bounds = array<i64: 8, 8>}, {transform_indices = @transform_1, window_bounds = array<i64: 9, 8>}]} {
    %c0 = arith.constant 0 : index
    %c0_0 = arith.constant 0 : index
    %0 = vector.load %arg1[%c0, %c0_0] : memref<8x8xf32, #tpu.memory_space<vmem>>, vector<8x8xf32>
    %cst = arith.constant dense<0xFF800000> : vector<8xf32>
    %1 = vector.multi_reduction <maximumf>, %0, %cst [0] : vector<8x8xf32> to vector<8xf32>
    %2 = vector.shape_cast %1 : vector<8xf32> to vector<1x8xf32>
    %3 = vector.broadcast %2 : vector<1x8xf32> to vector<8x8xf32>
    %4 = arith.subf %0, %3 : vector<8x8xf32>
    %5 = math.exp %4 : vector<8x8xf32>
    %cst_1 = arith.constant dense<0.000000e+00> : vector<8xf32>
    %6 = vector.multi_reduction <add>, %5, %cst_1 [0] : vector<8x8xf32> to vector<8xf32>
    %7 = vector.shape_cast %6 : vector<8xf32> to vector<1x8xf32>
    %8 = tpu.reciprocal %7 {approx = true} : vector<1x8xf32> -> vector<1x8xf32>
    %9 = arith.mulf %7, %8 : vector<1x8xf32>
    %cst_2 = arith.constant 2.000000e+00 : f32
    %10 = vector.broadcast %cst_2 : f32 to vector<1x8xf32>
    %11 = arith.subf %10, %9 : vector<1x8xf32>
    %12 = arith.mulf %8, %11 : vector<1x8xf32>
    %13 = vector.broadcast %12 : vector<1x8xf32> to vector<8x8xf32>
    %14 = arith.mulf %5, %13 : vector<8x8xf32>
    %c0_3 = arith.constant 0 : index
    %c0_4 = arith.constant 0 : index
    %15 = vector.load %arg2[%c0_3, %c0_4] : memref<9x8xf32, #tpu.memory_space<vmem>>, vector<8x8xf32>
    tpu.vector_store %arg2[%c0_3, %c0_4], %14 {strides = array<i32>} : memref<9x8xf32, #tpu.memory_space<vmem>>, vector<8x8xf32>,
    %cst_5 = arith.constant 0.000000e+00 : f32
    %16 = vector.broadcast %cst_5 : f32 to vector<1x8xf32>
    %c8 = arith.constant 8 : index
    %c0_6 = arith.constant 0 : index
    %17 = vector.load %arg2[%c8, %c0_6] : memref<9x8xf32, #tpu.memory_space<vmem>>, vector<1x8xf32>
    tpu.vector_store %arg2[%c8, %c0_6], %16 {strides = array<i32>} : memref<9x8xf32, #tpu.memory_space<vmem>>, vector<1x8xf32>,
    return
  }
  func.func @transform_0(%arg0: i32) -> (i32, i32) {
    %c0_i32 = arith.constant 0 : i32
    %c0_i32_0 = arith.constant 0 : i32
    return %c0_i32, %arg0 : i32, i32
  }
  func.func @transform_1(%arg0: i32) -> (i32, i32) {
    %c0_i32 = arith.constant 0 : i32
    %c0_i32_0 = arith.constant 0 : i32
    return %c0_i32, %arg0 : i32, i32
  }
}

</mosaic_0001>

<llo_original>
// kernel: tpu_custom_call.1
$region0: #{tpu_custom_call.1}
  #allocation0 [shape = 'u32[]', space=smem, size = 0x4, offset = 0x4, fixed_abs, tag = 'smem constant byte address 0x4 - core index']
  #allocation1 [shape = 'u32[144,128]{1,0:T(1,128)}', space=vmem, size = 0x12000, scoped, tag = 'internal scratch']
  %s0 = inlined_call_operand.hbm [shape: f32[8,8], index: 0, kind: input, shape index: {}]
  %s1 = inlined_call_operand.vmem [shape: f32[9,8], index: 1, kind: output, shape index: {}]
  %s2 = sld [smem:[#allocation0]]
  $region18: #{tpu_custom_call.1} parent=0
    _
  %s4 = ssub.s32 1, %s2
  %s5 = scalar_select 0, %s4, %s2
  $region1: #{tpu_custom_call.1} parent=0
    #allocation2 [shape = 'u8[4096]{0}', space=vmem, size = 0x1000, scoped, tag = 'input window, operand 0, single buffered']
    #allocation3 [shape = 's32[1]{0}', space=sflag, size = 0x4, scoped, tag = 'scoped memory for tpu_custom_call.1']
    %6 = vsyncpa [#allocation3], 0
    // Predicated region
    $region2: #{tpu_custom_call.1} parent=1 // pred_check
      _
    $region3: #{tpu_custom_call.1} parent=1 // pred_check_branch
      %8 = sbr.rel (0) target = $region5
    $region4: #{tpu_custom_call.1} parent=1 // pred_region
      %s10 = ssub.s32 128, 128
      %11 = vsyncadd [#allocation3], %s10
      %s13 = sshll.u32 [#allocation2], 4
      %s14 = int_to_ptr.vmem [resolvable:$true] %s13
      %16 = dma.hbm_to_vmem [thread:$0]  %s0, 128, %s14, [#allocation3]
    $region5: #{tpu_custom_call.1} parent=1 // pred_fallthru
      _
    // Predicated region
    $region6: #{tpu_custom_call.1} parent=1 // pred_check
      _
    $region7: #{tpu_custom_call.1} parent=1 // pred_check_branch
      %18 = sbr.rel (0) target = $region9
    $region8: #{tpu_custom_call.1} parent=1 // pred_region
      %19 = dma.done [#allocation3], 128
    $region9: #{tpu_custom_call.1} parent=1 // pred_fallthru
      _
    %v20 = vld [vmem:[#allocation2] sm:$0xff]
    %vm21 = vcmask 64512
    %v22 = vsel %vm21, %v20, -inf
    %v23 = vrot.slane %v22, 4
    %v24 = vmax.f32 %v22, %v23
    %v25 = vrot.slane %v24, 2
    %v26 = vmax.f32 %v24, %v25
    %v27 = vrot.slane %v26, 1
    %v28 = vmax.f32 %v26, %v27
    %v29 = vsub.f32 %v20, %v28
    %v30 = vmul.f32 %v29, 1.442695
    %v31 = vpow.pop %v30
    %v32 = vsel %vm21, %v31, 0.0
    %v33 = vrot.slane %v32, 4
    %v34 = vadd.f32 %v32, %v33
    %v35 = vrot.slane %v34, 2
    %v36 = vadd.f32 %v34, %v35
    %v37 = vrot.slane %v36, 1
    %v38 = vadd.f32 %v36, %v37
    %v39 = vrcp.pop %v38
    %v40 = vmul.f32 %v38, %v39
    %v41 = vsub.f32 2.0, %v40
    %v42 = vmul.f32 %v39, %v41
    %v43 = vmul.f32 %v31, %v42
    %44 = vst.msk [vmem:[%s1] sm:$0xff] %vm21, %v43
    %vm45 = vcmask 57344
    %46 = vst.msk [vmem:[%s1 + $0x8] sm:$0x1] %vm45, 0.0
    // Predicated region
    $region10: #{tpu_custom_call.1} parent=1 // pred_check
      _
    $region11: #{tpu_custom_call.1} parent=1 // pred_check_branch
      %48 = sbr.rel (0) target = $region13
    $region12: #{tpu_custom_call.1} parent=1 // pred_region
      _
    $region13: #{tpu_custom_call.1} parent=1 // pred_fallthru
      _
    // Predicated region
    $region14: #{tpu_custom_call.1} parent=1 // pred_check
      _
    $region15: #{tpu_custom_call.1} parent=1 // pred_check_branch
      %50 = sbr.rel (0) target = $region17
    $region16: #{tpu_custom_call.1} parent=1 // pred_region
      _
    $region17: #{tpu_custom_call.1} parent=1 // pred_fallthru
      _
    %51 = vsyncpa [#allocation3], 1

</llo_original>
